<compile_context>
chip_gen: v7x
topology: tpu7x:2x2x1
jax: 0.10.0
libtpu: 0.0.40
codegen_flags: <defaults>
</compile_context>

<pallas_src>
import functools
import math

import jax
import jax.numpy as jnp
from jax.experimental import pallas as pl
from jax.experimental.pallas import tpu as pltpu

_VMEM_LIMIT = 64 * 1024 * 1024  # safe on v5e/v6e (128 MiB phys) and v7x (64 MiB phys)

_CONTRACT_LAST_FIRST = (((1,), (0,)), ((), ()))   # A @ B
_CONTRACT_LAST_LAST = (((1,), (1,)), ((), ()))    # A @ B.T (no explicit transpose)


# ----------------------------------------------------------------------------
# Pallas kernels
# ----------------------------------------------------------------------------
def _linear_kernel(x_ref, w_ref, b_ref, o_ref):
    # o = x @ w + b   (bf16 operands, f32 accumulate, f32 epilogue)
    acc = jax.lax.dot_general(
        x_ref[...].astype(jnp.bfloat16), w_ref[...].astype(jnp.bfloat16),
        _CONTRACT_LAST_FIRST, preferred_element_type=jnp.float32)
    o_ref[...] = (acc + b_ref[...]).astype(o_ref.dtype)


def _layernorm_kernel(x_ref, g_ref, b_ref, o_ref):
    x = x_ref[...].astype(jnp.float32)
    mu = jnp.mean(x, axis=-1, keepdims=True)
    var = jnp.mean((x - mu) ** 2, axis=-1, keepdims=True)
    y = (x - mu) * jax.lax.rsqrt(var + 1e-5)
    o_ref[...] = (y * g_ref[...] + b_ref[...]).astype(o_ref.dtype)


def _ln_linear_kernel(x_ref, g_ref, b_ref, w_ref, bias_ref, o_ref):
    # o = LayerNorm(x) @ w + bias   (fused: no HBM round trip of the normalized rows)
    x = x_ref[...].astype(jnp.float32)
    mu = jnp.mean(x, axis=-1, keepdims=True)
    var = jnp.mean((x - mu) ** 2, axis=-1, keepdims=True)
    y = (x - mu) * jax.lax.rsqrt(var + 1e-5) * g_ref[...] + b_ref[...]
    acc = jax.lax.dot_general(
        y.astype(jnp.bfloat16), w_ref[...].astype(jnp.bfloat16),
        _CONTRACT_LAST_FIRST, preferred_element_type=jnp.float32)
    o_ref[...] = (acc + bias_ref[...]).astype(o_ref.dtype)


def _fused_block_kernel(x_ref, ln1g_ref, ln1b_ref, wqkv_ref, bqkv_ref,
                        wout_ref, bout_ref, ln2g_ref, ln2b_ref,
                        wfc_ref, bfc_ref, wproj_ref, bproj_ref, o_ref,
                        *, num_heads, causal):
    """One full residual-attention block for a single batch element (S, D)."""
    f32 = jnp.float32
    bf16 = jnp.bfloat16
    x = x_ref[0].astype(f32)                          # (S, D)
    S, D = x.shape
    Dh = D // num_heads
    scale = 1.0 / math.sqrt(Dh)

    def _ln(v, g_ref, b_ref):
        mu = jnp.mean(v, axis=-1, keepdims=True)
        var = jnp.mean((v - mu) ** 2, axis=-1, keepdims=True)
        return (v - mu) * jax.lax.rsqrt(var + 1e-5) * g_ref[...] + b_ref[...]

    # ---------------- attention sub-block (LN1 -> QKV -> MHA -> out-proj + res)
    h = _ln(x, ln1g_ref, ln1b_ref)
    qkv = jax.lax.dot_general(
        h.astype(bf16), wqkv_ref[...].astype(bf16),
        _CONTRACT_LAST_FIRST, preferred_element_type=f32) + bqkv_ref[...]   # (S, 3D)

    if causal:
        rows = jax.lax.broadcasted_iota(jnp.int32, (S, S), 0)
        cols = jax.lax.broadcasted_iota(jnp.int32, (S, S), 1)
        attn_bias = jnp.where(cols <= rows, 0.0, -1e9).astype(f32)
    else:
        attn_bias = None

    wout = wout_ref[...]                              # (D, D) bf16
    x_attn = x + bout_ref[...]                        # residual + out-proj bias
    for hd in range(num_heads):                       # static unroll over heads
        qh = qkv[:, hd * Dh:(hd + 1) * Dh]
        kh = qkv[:, D + hd * Dh:D + (hd + 1) * Dh]
        vh = qkv[:, 2 * D + hd * Dh:2 * D + (hd + 1) * Dh]
        s = jax.lax.dot_general(                      # q @ k^T, no explicit transpose
            qh.astype(bf16), kh.astype(bf16),
            _CONTRACT_LAST_LAST, preferred_element_type=f32) * scale
        if attn_bias is not None:
            s = s + attn_bias
        s = s - jnp.max(s, axis=-1, keepdims=True)
        p = jnp.exp(s)
        p = p * pl.reciprocal(jnp.sum(p, axis=-1, keepdims=True), approx=True)
        oh = jax.lax.dot_general(                     # (S, Dh)
            p.astype(bf16), vh.astype(bf16),
            _CONTRACT_LAST_FIRST, preferred_element_type=f32)
        # concat-of-heads @ W_out  ==  sum_h  oh @ W_out[h*Dh:(h+1)*Dh, :]
        x_attn = x_attn + jax.lax.dot_general(
            oh.astype(bf16), wout[hd * Dh:(hd + 1) * Dh, :],
            _CONTRACT_LAST_FIRST, preferred_element_type=f32)

    # ---------------- MLP sub-block (LN2 -> fc + QuickGELU -> proj + residual)
    h2 = _ln(x_attn, ln2g_ref, ln2b_ref)
    m = jax.lax.dot_general(
        h2.astype(bf16), wfc_ref[...].astype(bf16),
        _CONTRACT_LAST_FIRST, preferred_element_type=f32) + bfc_ref[...]
    m = m * jax.nn.sigmoid(1.702 * m)                 # QuickGELU, f32 elementwise
    out = x_attn + jax.lax.dot_general(
        m.astype(bf16), wproj_ref[...].astype(bf16),
        _CONTRACT_LAST_FIRST, preferred_element_type=f32) + bproj_ref[...]
    o_ref[0] = out.astype(o_ref.dtype)


# ----------------------------------------------------------------------------
# Pallas wrappers
# ----------------------------------------------------------------------------
def pallas_linear(x, w, b):
    """x: (M, K) f32, w: (K, N) bf16/f32, b: (N,) f32 -> (M, N) f32."""
    M, K = x.shape
    N = w.shape[1]
    tm = M
    for cand in (512, 256, 128):                      # pipeline over M when it is large
        if M > cand and M % cand == 0:
            tm = cand
            break
    return pl.pallas_call(
        _linear_kernel,
        out_shape=jax.ShapeDtypeStruct((M, N), jnp.float32),
        grid=(M // tm,),
        in_specs=[
            pl.BlockSpec((tm, K), lambda i: (i, 0)),
            pl.BlockSpec((K, N), lambda i: (0, 0)),
            pl.BlockSpec((1, N), lambda i: (0, 0)),
        ],
        out_specs=pl.BlockSpec((tm, N), lambda i: (i, 0)),
        compiler_params=pltpu.CompilerParams(
            dimension_semantics=("parallel",), vmem_limit_bytes=_VMEM_LIMIT),
    )(x, w, b.reshape(1, N))


def pallas_layernorm(x, g, b):
    """x: (M, D), g/b: (D,)"""
    M, D = x.shape
    return pl.pallas_call(
        _layernorm_kernel,
        out_shape=jax.ShapeDtypeStruct((M, D), x.dtype),
        grid=(1,),
        in_specs=[
            pl.BlockSpec((M, D), lambda i: (0, 0)),
            pl.BlockSpec((1, D), lambda i: (0, 0)),
            pl.BlockSpec((1, D), lambda i: (0, 0)),
        ],
        out_specs=pl.BlockSpec((M, D), lambda i: (0, 0)),
        compiler_params=pltpu.CompilerParams(
            dimension_semantics=("arbitrary",), vmem_limit_bytes=_VMEM_LIMIT),
    )(x, g.reshape(1, D), b.reshape(1, D))


def pallas_ln_linear(x, g, b, w, bias):
    """LayerNorm(x) @ w + bias.  x: (M, D), w: (D, N)."""
    M, D = x.shape
    N = w.shape[1]
    return pl.pallas_call(
        _ln_linear_kernel,
        out_shape=jax.ShapeDtypeStruct((M, N), jnp.float32),
        grid=(1,),
        in_specs=[
            pl.BlockSpec((M, D), lambda i: (0, 0)),
            pl.BlockSpec((1, D), lambda i: (0, 0)),
            pl.BlockSpec((1, D), lambda i: (0, 0)),
            pl.BlockSpec((D, N), lambda i: (0, 0)),
            pl.BlockSpec((1, N), lambda i: (0, 0)),
        ],
        out_specs=pl.BlockSpec((M, N), lambda i: (0, 0)),
        compiler_params=pltpu.CompilerParams(
            dimension_semantics=("arbitrary",), vmem_limit_bytes=_VMEM_LIMIT),
    )(x, g.reshape(1, D), b.reshape(1, D), w, bias.reshape(1, N))


def transformer_block(x, lp, num_heads, *, causal):
    """One fused residual-attention block.  x: (B, S, D) f32."""
    B, S, D = x.shape
    kern = functools.partial(_fused_block_kernel, num_heads=num_heads, causal=causal)

    def rep(shape):
        return pl.BlockSpec(shape, lambda b: (0, 0))

    return pl.pallas_call(
        kern,
        out_shape=jax.ShapeDtypeStruct((B, S, D), x.dtype),
        grid=(B,),
        in_specs=[
            pl.BlockSpec((1, S, D), lambda b: (b, 0, 0)),
            rep((1, D)), rep((1, D)),
            rep((D, 3 * D)), rep((1, 3 * D)),
            rep((D, D)), rep((1, D)),
            rep((1, D)), rep((1, D)),
            rep((D, 4 * D)), rep((1, 4 * D)),
            rep((4 * D, D)), rep((1, D)),
        ],
        out_specs=pl.BlockSpec((1, S, D), lambda b: (b, 0, 0)),
        compiler_params=pltpu.CompilerParams(
            dimension_semantics=("parallel",), vmem_limit_bytes=_VMEM_LIMIT),
    )(x,
      lp["ln1_g"].reshape(1, D), lp["ln1_b"].reshape(1, D),
      lp["w_qkv"], lp["b_qkv"].reshape(1, 3 * D),
      lp["w_out"], lp["b_out"].reshape(1, D),
      lp["ln2_g"].reshape(1, D), lp["ln2_b"].reshape(1, D),
      lp["w_fc"], lp["b_fc"].reshape(1, 4 * D),
      lp["w_proj"], lp["b_proj"].reshape(1, D))


# ----------------------------------------------------------------------------
# Model pieces (glue in plain JAX, compute in Pallas)
# ----------------------------------------------------------------------------
def prompt_learner_forward(params, cfg, num_batch):
    n_ctx, ctx_dim = cfg["n_ctx"], cfg["ctx_dim"]
    ctx = params["ctx"]                                        # (n_ctx, ctx_dim)
    prompts = jnp.broadcast_to(ctx[None], (num_batch, n_ctx, ctx_dim))
    shared_ctx = pallas_linear(ctx, params["proj_w"], params["proj_b"])  # (n_ctx, vis_dim)
    deep_text = params["compound_prompts_text"]                # list of (n_ctx, ctx_dim)
    deep_vis = [
        pallas_linear(deep_text[i], params["compound_proj_w"][i], params["compound_proj_b"][i])
        for i in range(len(deep_text))
    ]
    return prompts, shared_ctx, deep_text, deep_vis


def text_encoder_forward(params, cfg, text_embedding, deep_prompts):
    """Runs the text transformer; returns the (B, L, ctx_dim) token activations."""
    B, L, D = text_embedding.shape
    n_ctx = cfg["n_ctx"]
    x = text_embedding + params["positional_embedding"][None]
    counter = 0
    for i, lp in enumerate(params["text_layers"]):
        if i > 0 and counter < len(deep_prompts):
            tp = jnp.broadcast_to(deep_prompts[counter][None], (B, n_ctx, D))
            x = jnp.concatenate([x[:, :1], tp, x[:, 1 + n_ctx:]], axis=1)
            counter += 1
        x = transformer_block(x, lp, cfg["text_heads"], causal=True)
    return x


def text_features_at_eot(params, cfg, x_tokens, text_ids):
    """ln_final + text_projection applied only to the gathered EOT rows."""
    B = x_tokens.shape[0]
    eot = jnp.argmax(text_ids, axis=-1) + cfg["n_ctx"]
    rows = x_tokens[jnp.arange(B), eot]                        # (B, ctx_dim)
    zeros_bias = jnp.zeros((cfg["embed_dim"],), jnp.float32)
    return pallas_ln_linear(rows, params["ln_final_g"], params["ln_final_b"],
                            params["text_projection"], zeros_bias).astype(jnp.float32)


def image_encoder_forward(params, cfg, image, shared_ctx, deep_vis_prompts):
    """Runs the visual transformer (with MaPLe VPT prompts); returns (B, Sv, vis_dim)."""
    B, C, H, W = image.shape
    p, Dv, n_ctx = cfg["patch"], cfg["vis_dim"], cfg["n_ctx"]
    assert H % p == 0 and W % p == 0
    gh, gw = H // p, W // p
    # conv1 (stride == kernel, no bias)  ->  im2col + Pallas matmul.
    # conv1 weight is pre-reshaped/transposed at init (conv1_w_mat: (C*p*p, Dv)).
    patches = (
        image.reshape(B, C, gh, p, gw, p)
        .transpose(0, 2, 4, 1, 3, 5)
        .reshape(B * gh * gw, C * p * p)
    )
    x = pallas_linear(patches, params["conv1_w_mat"],
                      jnp.zeros((Dv,), jnp.float32)).reshape(B, gh * gw, Dv)
    cls = jnp.broadcast_to(params["class_embedding"][None, None], (B, 1, Dv))
    x = jnp.concatenate([cls, x], axis=1)
    x = x + params["vis_positional_embedding"][None]
    vctx = jnp.broadcast_to(shared_ctx[None], (B, n_ctx, Dv))
    x = jnp.concatenate([x, vctx], axis=1)                      # append VPT prompts
    Sv = x.shape[1]
    x = pallas_layernorm(x.reshape(B * Sv, Dv),
                         params["ln_pre_g"], params["ln_pre_b"]).reshape(B, Sv, Dv)
    counter = 0
    for i, lp in enumerate(params["vis_layers"]):
        if i > 0 and counter < len(deep_vis_prompts):
            vp = jnp.broadcast_to(deep_vis_prompts[counter][None], (B, n_ctx, Dv))
            x = jnp.concatenate([x[:, : Sv - n_ctx], vp], axis=1)
            counter += 1
        x = transformer_block(x, lp, cfg["vis_heads"], causal=False)
    return x


def image_features_at_cls(params, cfg, x_tokens):
    """ln_post + vis_proj applied only to the CLS row."""
    rows = x_tokens[:, 0, :]                                    # (B, vis_dim)
    zeros_bias = jnp.zeros((cfg["embed_dim"],), jnp.float32)
    return pallas_ln_linear(rows, params["ln_post_g"], params["ln_post_b"],
                            params["vis_proj"], zeros_bias).astype(jnp.float32)


# ----------------------------------------------------------------------------
# CustomCLIP.forward
# ----------------------------------------------------------------------------
def custom_clip_forward(params, cfg, batch=None, text=None, img=None,
                        img_memory=None, text_memory=None,
                        instance_img_memory=None, instance_text_memory=None):
    n_ctx = cfg["n_ctx"]

    def build_text_embedding(text_ids, prompts):
        emb = params["token_embedding"][text_ids]               # (B, L, ctx_dim)
        prefix = emb[:, :1, :]
        suffix = emb[:, 1:-n_ctx, :]
        return jnp.concatenate([prefix, prompts, suffix], axis=1)

    if batch is not None:
        ret = {}
        logit_scale = jnp.exp(params["logit_scale"])
        text_ids = batch["caption_ids"]
        image = batch["images"]
        ret["temperature"] = 1.0 / logit_scale
        num_batch = image.shape[0]
        prompts, shared_ctx, deep_text, deep_vis = prompt_learner_forward(params, cfg, num_batch)
        text_embedding = build_text_embedding(text_ids, prompts)
        text_tokens = text_encoder_forward(params, cfg, text_embedding, deep_text)
        image_tokens = image_encoder_forward(params, cfg, image, shared_ctx, deep_vis)
        t_feat = text_features_at_eot(params, cfg, text_tokens, text_ids)
        i_feat = image_features_at_cls(params, cfg, image_tokens)
        del t_feat, i_feat
        # TODO(synk): objectives.compute_{memory,instance_memory,TAL,itc,sdm} come from an
        # external `objectives` module that is not provided; loss branches are omitted.
        return ret
    elif text is not None:
        num_batch = text.shape[0]
        prompts, shared_ctx, deep_text, deep_vis = prompt_learner_forward(params, cfg, num_batch)
        text_embedding = build_text_embedding(text, prompts)
        text_tokens = text_encoder_forward(params, cfg, text_embedding, deep_text)
        return text_features_at_eot(params, cfg, text_tokens, text)
    else:
        image = img
        num_batch = image.shape[0]
        prompts, shared_ctx, deep_text, deep_vis = prompt_learner_forward(params, cfg, num_batch)
        image_tokens = image_encoder_forward(params, cfg, image, shared_ctx, deep_vis)
        return image_features_at_cls(params, cfg, image_tokens)


# ----------------------------------------------------------------------------
# Deterministic parameter initialisation (synthetic, small shapes)
# ----------------------------------------------------------------------------
def init_params(key, cfg):
    keys = iter(jax.random.split(key, 64))

    def nrm(shape, std=0.02):
        return jax.random.normal(next(keys), shape, jnp.float32) * std

    def bf(a):
        return a.astype(jnp.bfloat16)   # matmul weights live in bf16 (f32 accumulate)

    def block(D):
        return dict(
            ln1_g=jnp.ones((D,), jnp.float32), ln1_b=jnp.zeros((D,), jnp.float32),
            w_qkv=bf(nrm((D, 3 * D))), b_qkv=jnp.zeros((3 * D,), jnp.float32),
            w_out=bf(nrm((D, D))), b_out=jnp.zeros((D,), jnp.float32),
            ln2_g=jnp.ones((D,), jnp.float32), ln2_b=jnp.zeros((D,), jnp.float32),
            w_fc=bf(nrm((D, 4 * D))), b_fc=jnp.zeros((4 * D,), jnp.float32),
            w_proj=bf(nrm((4 * D, D))), b_proj=jnp.zeros((D,), jnp.float32),
        )

    Dt, Dv, E = cfg["ctx_dim"], cfg["vis_dim"], cfg["embed_dim"]
    n_ctx, depth = cfg["n_ctx"], cfg["prompt_depth"]
    n_patch_tokens = 1 + (cfg["img_size"] // cfg["patch"]) ** 2
    p = cfg["patch"]

    conv1_w = nrm((Dv, 3, p, p))
    params = dict(
        # MultiModalPromptLearner
        ctx=nrm((n_ctx, Dt)),
        proj_w=bf(nrm((Dt, Dv))), proj_b=jnp.zeros((Dv,), jnp.float32),
        # NOTE: the PyTorch code hardcodes 512 for compound prompts; we use ctx_dim for small shapes.
        compound_prompts_text=[nrm((n_ctx, Dt)) for _ in range(depth - 1)],
        compound_proj_w=[bf(nrm((Dt, Dv))) for _ in range(depth - 1)],
        compound_proj_b=[jnp.zeros((Dv,), jnp.float32) for _ in range(depth - 1)],
        # CLIP text side
        token_embedding=nrm((cfg["vocab"], Dt)),
        positional_embedding=nrm((cfg["seq_len"], Dt), std=0.01),
        text_layers=[block(Dt) for _ in range(cfg["text_layers"])],
        ln_final_g=jnp.ones((Dt,), jnp.float32), ln_final_b=jnp.zeros((Dt,), jnp.float32),
        text_projection=bf(nrm((Dt, E))),
        logit_scale=jnp.asarray(math.log(1.0 / 0.07), jnp.float32),
        # CLIP visual side (conv1 weight pre-reshaped/transposed for the im2col matmul)
        conv1_w_mat=bf(conv1_w.reshape(Dv, 3 * p * p).T),
        class_embedding=nrm((Dv,)),
        vis_positional_embedding=nrm((n_patch_tokens, Dv), std=0.01),
        ln_pre_g=jnp.ones((Dv,), jnp.float32), ln_pre_b=jnp.zeros((Dv,), jnp.float32),
        vis_layers=[block(Dv) for _ in range(cfg["vis_layers"])],
        ln_post_g=jnp.ones((Dv,), jnp.float32), ln_post_b=jnp.zeros((Dv,), jnp.float32),
        vis_proj=bf(nrm((Dv, E))),
    )
    return params


# ----------------------------------------------------------------------------
if __name__ == "__main__":
    cfg = dict(
        batch=2,
        n_ctx=2,            # args.num_context
        prompt_depth=2,     # args.prompt_depth (>= 1)
        ctx_dim=32,         # text transformer width (ln_final.weight.shape[0])
        vis_dim=48,         # vision transformer width (768 in real CLIP)
        embed_dim=32,       # CLIP joint embedding dim (512 in real CLIP)
        vocab=64,
        seq_len=8,
        text_layers=2,
        vis_layers=2,
        text_heads=4,
        vis_heads=4,
        img_size=16,
        patch=8,
    )

    key = jax.random.PRNGKey(0)
    kp, kt, ki = jax.random.split(key, 3)
    params = init_params(kp, cfg)

    B, L, V = cfg["batch"], cfg["seq_len"], cfg["vocab"]
    caption_ids = jax.random.randint(kt, (B, L), 1, V - 2)
    caption_ids = caption_ids.at[:, 0].set(1)            # BOS-ish token
    caption_ids = caption_ids.at[:, 3].set(V - 1)        # EOT token (argmax position = 3)
    images = jax.random.normal(ki, (B, 3, cfg["img_size"], cfg["img_size"]), jnp.float32)

    # batch path (losses omitted -> only temperature), text-only path, image-only path
    ret = custom_clip_forward(params, cfg, batch={"caption_ids": caption_ids, "images": images})
    t_feat = custom_clip_forward(params, cfg, text=caption_ids)
    i_feat = custom_clip_forward(params, cfg, img=images)

    jax.block_until_ready((ret["temperature"], t_feat, i_feat))
    assert t_feat.shape == (B, cfg["embed_dim"]) and t_feat.dtype == jnp.float32
    assert i_feat.shape == (B, cfg["embed_dim"]) and i_feat.dtype == jnp.float32
    assert bool(jnp.all(jnp.isfinite(t_feat))) and bool(jnp.all(jnp.isfinite(i_feat)))
    print("KERNEL_OK")
</pallas_src>

<mosaic_0001>
module attributes {stable_mosaic.version = 11 : i64} {
  func.func @_linear_kernel(%arg0: i32, %arg1: memref<2x32xf32, #tpu.memory_space<vmem>>, %arg2: memref<32x48xbf16, #tpu.memory_space<vmem>>, %arg3: memref<1x48xf32, #tpu.memory_space<vmem>>, %arg4: memref<2x48xf32, #tpu.memory_space<vmem>>) attributes {dimension_semantics = [#tpu.dimension_semantics<parallel>], iteration_bounds = array<i64: 1>, scalar_prefetch = 0 : i64, scratch_operands = 0 : i64, tpu.core_type = #tpu.core_type<tc>, window_params = [{transform_indices = @transform_0, window_bounds = array<i64: 2, 32>}, {pipeline_mode = #tpu.pipeline_mode<synchronous>, transform_indices = @transform_1, window_bounds = array<i64: 32, 48>}, {pipeline_mode = #tpu.pipeline_mode<synchronous>, transform_indices = @transform_2, window_bounds = array<i64: 1, 48>}, {transform_indices = @transform_3, window_bounds = array<i64: 2, 48>}]} {
    %c0 = arith.constant 0 : index
    %c0_0 = arith.constant 0 : index
    %0 = vector.load %arg1[%c0, %c0_0] : memref<2x32xf32, #tpu.memory_space<vmem>>, vector<2x32xf32>
    %1 = arith.truncf %0 : vector<2x32xf32> to vector<2x32xbf16>
    %c0_1 = arith.constant 0 : index
    %c0_2 = arith.constant 0 : index
    %2 = vector.load %arg2[%c0_1, %c0_2] : memref<32x48xbf16, #tpu.memory_space<vmem>>, vector<32x48xbf16>
    %cst = arith.constant dense<0.000000e+00> : vector<2x48xf32>
    %3 = tpu.matmul %1, %2, %cst {dimension_numbers = #tpu.dot_dimension_numbers<[1], [0], [0], [1], [0, 0, 1, 1], [], []>} : vector<2x32xbf16>, vector<32x48xbf16>, vector<2x48xf32> -> vector<2x48xf32>
    %c0_3 = arith.constant 0 : index
    %c0_4 = arith.constant 0 : index
    %4 = vector.load %arg3[%c0_3, %c0_4] : memref<1x48xf32, #tpu.memory_space<vmem>>, vector<1x48xf32>
    %5 = vector.broadcast %4 : vector<1x48xf32> to vector<2x48xf32>
    %6 = arith.addf %3, %5 : vector<2x48xf32>
    %c0_5 = arith.constant 0 : index
    %c0_6 = arith.constant 0 : index
    %7 = vector.load %arg4[%c0_5, %c0_6] : memref<2x48xf32, #tpu.memory_space<vmem>>, vector<2x48xf32>
    tpu.vector_store %arg4[%c0_5, %c0_6], %6 {strides = array<i32>} : memref<2x48xf32, #tpu.memory_space<vmem>>, vector<2x48xf32>,
    return
  }
  func.func @transform_0(%arg0: i32) -> (i32, i32) {
    %c0_i32 = arith.constant 0 : i32
    %c0_i32_0 = arith.constant 0 : i32
    return %arg0, %c0_i32 : i32, i32
  }
  func.func @transform_1(%arg0: i32) -> (i32, i32) {
    %c0_i32 = arith.constant 0 : i32
    %c0_i32_0 = arith.constant 0 : i32
    %c0_i32_1 = arith.constant 0 : i32
    return %c0_i32, %c0_i32_0 : i32, i32
  }
  func.func @transform_2(%arg0: i32) -> (i32, i32) {
    %c0_i32 = arith.constant 0 : i32
    %c0_i32_0 = arith.constant 0 : i32
    %c0_i32_1 = arith.constant 0 : i32
    return %c0_i32, %c0_i32_0 : i32, i32
  }
  func.func @transform_3(%arg0: i32) -> (i32, i32) {
    %c0_i32 = arith.constant 0 : i32
    %c0_i32_0 = arith.constant 0 : i32
    return %arg0, %c0_i32 : i32, i32
  }
}

</mosaic_0001>

<llo_original>
// kernel: tpu_custom_call.1
$region0: #{tpu_custom_call.1}
  #allocation0 [shape = 'u32[]', space=smem, size = 0x4, offset = 0x4, fixed_abs, tag = 'smem constant byte address 0x4 - core index']
  #allocation1 [shape = 'u32[144,128]{1,0:T(1,128)}', space=vmem, size = 0x12000, scoped, tag = 'internal scratch']
  %s0 = inlined_call_operand.hbm [shape: f32[2,32], index: 0, kind: input, shape index: {}]
  %s1 = inlined_call_operand.hbm [shape: bf16[32,48], index: 1, kind: input, shape index: {}]
  %s2 = inlined_call_operand.hbm [shape: f32[1,48], index: 2, kind: input, shape index: {}]
  %s3 = inlined_call_operand.hbm [shape: f32[2,48], index: 3, kind: output, shape index: {}]
  %s4 = sld [smem:[#allocation0]]
  $region34: #{tpu_custom_call.1} parent=0
    _
  %s6 = ssub.s32 1, %s4
  %s7 = scalar_select 0, %s6, %s4
  $region1: #{tpu_custom_call.1} parent=0
    #allocation2 [shape = 'u8[1024]{0}', space=vmem, size = 0x400, scoped, tag = 'input window, operand 0, single buffered']
    #allocation3 [shape = 's32[1]{0}', space=sflag, size = 0x4, scoped, tag = 'scoped memory for tpu_custom_call.1']
    #allocation4 [shape = 's32[1]{0}', space=sflag, size = 0x4, scoped, tag = 'scoped memory for tpu_custom_call.1']
    #allocation5 [shape = 'u8[8192]{0}', space=vmem, size = 0x2000, scoped, tag = 'input window, operand 1, single buffered']
    #allocation6 [shape = 's32[1]{0}', space=sflag, size = 0x4, scoped, tag = 'scoped memory for tpu_custom_call.1']
    #allocation7 [shape = 'u8[512]{0}', space=vmem, size = 0x400, scoped, tag = 'input window, operand 2, single buffered']
    #allocation8 [shape = 'u8[1024]{0}', space=vmem, size = 0x400, scoped, tag = 'output window, operand 0, single buffered']
    %8 = vsyncpa [#allocation3], 0
    %9 = vsyncpa [#allocation6], 0
    %10 = vsyncpa [#allocation4], 0
    // Predicated region
    $region2: #{tpu_custom_call.1} parent=1 // pred_check
      _
    $region3: #{tpu_custom_call.1} parent=1 // pred_check_branch
      %12 = sbr.rel (0) target = $region5
    $region4: #{tpu_custom_call.1} parent=1 // pred_region
      %s14 = ssub.s32 32, 32
      %15 = vsyncadd [#allocation3], %s14
      %s17 = sshll.u32 [#allocation2], 4
      %s18 = int_to_ptr.vmem [resolvable:$true] %s17
      %20 = dma.hbm_to_vmem [thread:$0]  %s0, 32, %s18, [#allocation3]
    $region5: #{tpu_custom_call.1} parent=1 // pred_fallthru
      _
    // Predicated region
    $region6: #{tpu_custom_call.1} parent=1 // pred_check
      _
    $region7: #{tpu_custom_call.1} parent=1 // pred_check_branch
      %22 = sbr.rel (0) target = $region9
    $region8: #{tpu_custom_call.1} parent=1 // pred_region
      %s24 = ssub.s32 256, 256
      %25 = vsyncadd [#allocation6], %s24
      %s26 = sshll.u32 [#allocation5], 4
      %s27 = int_to_ptr.vmem [resolvable:$true] %s26
      %32 = dma.hbm_to_vmem [thread:$0]  %s1, 256, %s27, [#allocation6], 64, 64, 4
    $region9: #{tpu_custom_call.1} parent=1 // pred_fallthru
      _
    // Predicated region
    $region10: #{tpu_custom_call.1} parent=1 // pred_check
      _
    $region11: #{tpu_custom_call.1} parent=1 // pred_check_branch
      %34 = sbr.rel (0) target = $region13
    $region12: #{tpu_custom_call.1} parent=1 // pred_region
      %s36 = ssub.s32 16, 16
      %37 = vsyncadd [#allocation6], %s36
      %s39 = sshll.u32 [#allocation7], 4
      %s40 = int_to_ptr.vmem [resolvable:$true] %s39
      %42 = dma.hbm_to_vmem [thread:$0]  %s2, 16, %s40, [#allocation6]
    $region13: #{tpu_custom_call.1} parent=1 // pred_fallthru
      _
    // Predicated region
    $region14: #{tpu_custom_call.1} parent=1 // pred_check
      _
    $region15: #{tpu_custom_call.1} parent=1 // pred_check_branch
      %44 = sbr.rel (0) target = $region17
    $region16: #{tpu_custom_call.1} parent=1 // pred_region
      %45 = dma.done [#allocation3], 32
    $region17: #{tpu_custom_call.1} parent=1 // pred_fallthru
      _
    // Predicated region
    $region18: #{tpu_custom_call.1} parent=1 // pred_check
      _
    $region19: #{tpu_custom_call.1} parent=1 // pred_check_branch
      %47 = sbr.rel (0) target = $region21
    $region20: #{tpu_custom_call.1} parent=1 // pred_region
      %48 = dma.done [#allocation6], 256
    $region21: #{tpu_custom_call.1} parent=1 // pred_fallthru
      _
    // Predicated region
    $region22: #{tpu_custom_call.1} parent=1 // pred_check
      _
    $region23: #{tpu_custom_call.1} parent=1 // pred_check_branch
      %50 = sbr.rel (0) target = $region25
    $region24: #{tpu_custom_call.1} parent=1 // pred_region
      %51 = dma.done [#allocation6], 16
    $region25: #{tpu_custom_call.1} parent=1 // pred_fallthru
      _
    %v53 = vld [vmem:[#allocation2] sm:$0x3]
    %v54 = vpack.c.bf16 %v53, %v53
    %v55 = vld [vmem:[#allocation5] sm:$0xf]
    %v56 = vld [vmem:[#allocation5 + $0x4] sm:$0xf]
    %v57 = vld [vmem:[#allocation5 + $0x8] sm:$0xf]
    %v58 = vld [vmem:[#allocation5 + $0xc] sm:$0xf]
    %v59 = vld [vmem:[#allocation7] sm:$0x1]
    %v61 = vlaneseq
    %v62 = vshrl.u32 %v61, 7
    %v63 = vsub.s32 0, %v62
    %v64 = vrot.slane %v59, %v63
    %v70 = vunpack.c.l.b16 %v55
    %v71 = vunpack.c.l.b16 %v56
    %v72 = vunpack.c.l.b16 %v57
    %v73 = vunpack.c.l.b16 %v58
    %v74 = vpack.c.b16 %v71, %v70
    %v75 = vpack.c.b16 %v73, %v72
    %vm78 = vcmask 261120
    %v80 = vsel %vm78, %v54, 0
    %82 = vmatprep.subr.bf16.mxu0 0
    %83 = vmatpush1.bf16.msra.mxu0 %v74
    %84 = vmatprep.subr.bf16.mxu0 0
    %85 = vmatpush1.bf16.msra.mxu0 %v75
    %86 = vmatprep.subr.bf16.mxu0 0
    %87 = vmatpush1.bf16.msra.mxu0 0
    %88 = vmatprep.subr.bf16.mxu0 0
    %89 = vmatpush1.bf16.msra.mxu0 0
    %90 = vmatprep.subr.bf16.mxu0 0
    %91 = vmatpush1.bf16.msra.mxu0 0
    %92 = vmatprep.subr.bf16.mxu0 0
    %93 = vmatpush1.bf16.msra.mxu0 0
    %94 = vmatprep.subr.bf16.mxu0 0
    %95 = vmatpush1.bf16.msra.mxu0 0
    %96 = vmatprep.subr.bf16.mxu0 0
    %97 = vmatpush1.bf16.msra.mxu0 0
    %98 = vmatprep.subr.bf16.mxu0 0
    %99 = vmatpush1.bf16.msra.mxu0 0
    %100 = vmatprep.subr.bf16.mxu0 0
    %101 = vmatpush1.bf16.msra.mxu0 0
    %102 = vmatprep.subr.bf16.mxu0 0
    %103 = vmatpush1.bf16.msra.mxu0 0
    %104 = vmatprep.subr.bf16.mxu0 0
    %105 = vmatpush1.bf16.msra.mxu0 0
    %106 = vmatprep.subr.bf16.mxu0 0
    %107 = vmatpush1.bf16.msra.mxu0 0
    %108 = vmatprep.subr.bf16.mxu0 0
    %109 = vmatpush1.bf16.msra.mxu0 0
    %110 = vmatprep.subr.bf16.mxu0 0
    %111 = vmatpush1.bf16.msra.mxu0 0
    %112 = vmatprep.subr.bf16.mxu0 0
    %113 = vmatpush1.bf16.msra.mxu0 0
    %114 = vmatprep.mubr.bf16.mxu0 0
    %115 = vmatmul.mubr.bf16.gmra.mrb[0].mxu0 %v80
    %v116 = vpop.f32.mrb[0].mxu0
    %v117 = vadd.f32 %v64, %v116
    %v118 = vpop.f32.mrb[0].mxu0
    %v119 = vpop.f32.mrb[0].mxu0
    %v120 = vpop.f32.mrb[0].mxu0
    %121 = vdwg.mxu0
    %vm122 = vcmask 386048
    %123 = vst.msk [vmem:[#allocation8] sm:$0x3] %vm122, %v117
    // Predicated region
    $region26: #{tpu_custom_call.1} parent=1 // pred_check
      _
    $region27: #{tpu_custom_call.1} parent=1 // pred_check_branch
      %125 = sbr.rel (0) target = $region29
    $region28: #{tpu_custom_call.1} parent=1 // pred_region
      %s127 = ssub.s32 32, 32
      %128 = vsyncadd [#allocation4], %s127
      %s130 = sshll.u32 [#allocation8], 4
      %s131 = int_to_ptr.vmem [resolvable:$true] %s130
      %133 = dma.vmem_to_hbm [thread:$0]  %s131, 32, %s3, [#allocation4]
    $region29: #{tpu_custom_call.1} parent=1 // pred_fallthru
      _
    // Predicated region
    $region30: #{tpu_custom_call.1} parent=1 // pred_check
      _
    $region31: #{tpu_custom_call.1} parent=1 // pred_check_branch
      %135 = sbr.rel (0) target = $region33
    $region32: #{tpu_custom_call.1} parent=1 // pred_region
      %136 = dma.done [#allocation4], 32
    $region33: #{tpu_custom_call.1} parent=1 // pred_fallthru
      _
    %137 = vsyncpa [#allocation3], 1
    %138 = vsyncpa [#allocation6], 1
    %139 = vsyncpa [#allocation4], 1

</llo_original>
